<compile_context>
chip_gen: v7x
topology: tpu7x:2x2x1
jax: 0.10.0
libtpu: 0.0.40
codegen_flags: <defaults>
</compile_context>

<pallas_src>
import functools

import jax
import jax.numpy as jnp
from jax.experimental import pallas as pl
from jax.experimental.pallas import tpu as pltpu


def _pe_dropout_kernel(seed_ref, x_ref, pe_ref, o_ref, *, dropout_p, training, batch):
    """Adds positional encoding and (optionally) applies inverted dropout.

    seed_ref : SMEM scalar-prefetch ref, shape (1,), int32
    x_ref    : VMEM tile [tS, B*D]   (lane-dense view of x[S, B, D])
    pe_ref   : VMEM tile [tS, D]
    o_ref    : VMEM tile [tS, B*D]
    """
    x = x_ref[...]                            # native dtype (bf16 stays bf16)
    pe = pe_ref[...].astype(x.dtype)          # [tS, D]
    if batch > 1:
        # Broadcast over batch = repeat along the lane axis: [tS, B*D].
        pe = jnp.concatenate([pe] * batch, axis=1)
    y = x + pe

    if training and dropout_p >= 1.0:
        # Degenerate case: everything dropped (avoids uint32 threshold overflow).
        y = jnp.zeros_like(y)
    elif training and dropout_p > 0.0:
        # Counter-based hash PRNG in plain jnp ops (no pltpu.prng_* needed).
        shape = y.shape
        row = jax.lax.broadcasted_iota(jnp.int32, shape, 0).astype(jnp.uint32)
        col = jax.lax.broadcasted_iota(jnp.int32, shape, 1).astype(jnp.uint32)
        base = (seed_ref[0].astype(jnp.uint32)
                + pl.program_id(0).astype(jnp.uint32) * jnp.uint32(0x9E3779B1))
        h = base + row * jnp.uint32(0x85EBCA77) + col * jnp.uint32(0xC2B2AE3D)
        # splitmix32-style finalizer
        h = h ^ (h >> 16)
        h = h * jnp.uint32(0x7FEB352D)
        h = h ^ (h >> 15)
        h = h * jnp.uint32(0x846CA68B)
        h = h ^ (h >> 16)
        thresh = jnp.uint32(min(int(dropout_p * 4294967296.0), 4294967295))
        keep = h >= thresh                    # P(keep) = 1 - p
        scale = jnp.asarray(1.0 / (1.0 - dropout_p), dtype=y.dtype)
        y = jnp.where(keep, y * scale, jnp.zeros_like(y))

    o_ref[...] = y.astype(o_ref.dtype)


def _pick_seq_tile(S, row_bytes):
    """Largest multiple-of-8 divisor of S giving ~<=2 MiB blocks and >=4 steps
    when S is large enough.  Assumes S % 8 == 0."""
    target = max(8, (2 << 20) // max(row_bytes, 1))   # ~2 MiB per block
    target = min(target, max(8, S // 4))              # prefer >=4 grid steps
    target = min(target, S)
    target = max(8, (target // 8) * 8)
    for t in range(target, 7, -8):
        if S % t == 0:
            return t
    return S


def learnable_positional_encoding(x, pe, *, dropout_p=0.1, training=False, seed=0):
    """x: [S, B, D], pe: [max_len, 1, D] -> [S, B, D]."""
    S, B, D = x.shape
    max_len = pe.shape[0]
    assert S <= max_len, "sequence length exceeds max_len of positional encoding"

    # Lane-dense 2D views (row-major reshapes: metadata-only, no HBM copies).
    x2 = x.reshape(S, B * D)
    pe2 = pe.reshape(max_len, D)

    if S % 8 == 0:
        tS = _pick_seq_tile(S, B * D * x.dtype.itemsize)
    else:
        # Ragged seq: use full-extent blocks (exempt from the (8,128) rule);
        # pe must then be cropped so its block also equals the full extent.
        tS = S
        pe2 = pe2[:S]

    grid = (pl.cdiv(S, tS),)

    kernel = functools.partial(
        _pe_dropout_kernel,
        dropout_p=float(dropout_p),
        training=bool(training),
        batch=B,
    )

    seed_arr = jnp.asarray([seed], dtype=jnp.int32)

    out2 = pl.pallas_call(
        kernel,
        out_shape=jax.ShapeDtypeStruct((S, B * D), x.dtype),
        grid_spec=pltpu.PrefetchScalarGridSpec(
            num_scalar_prefetch=1,
            grid=grid,
            in_specs=[
                pl.BlockSpec((tS, B * D), lambda i, seed: (i, 0)),
                pl.BlockSpec((tS, D), lambda i, seed: (i, 0)),
            ],
            out_specs=pl.BlockSpec((tS, B * D), lambda i, seed: (i, 0)),
        ),
        compiler_params=pltpu.CompilerParams(
            # Tiles are independent (per-tile hashed PRNG stream) -> parallel,
            # so v7x's two TensorCores can split the grid.
            dimension_semantics=("parallel",),
        ),
    )(seed_arr, x2, pe2)

    return out2.reshape(S, B, D)


if __name__ == "__main__":
    # Small shapes consistent with the module: [seq, batch, d_model]
    S, B, D = 8, 4, 128
    MAX_LEN = 1024

    key = jax.random.PRNGKey(0)
    kx, kpe = jax.random.split(key)

    x = jax.random.normal(kx, (S, B, D), dtype=jnp.float32)
    # nn.init.uniform_(pe, -0.02, 0.02)
    pe = jax.random.uniform(kpe, (MAX_LEN, 1, D), dtype=jnp.float32,
                            minval=-0.02, maxval=0.02)

    # Eval mode (dropout is identity) — must match pure-JAX reference exactly.
    out_eval = jax.block_until_ready(
        learnable_positional_encoding(x, pe, dropout_p=0.1, training=False))
    ref = x + pe[:S]
    assert out_eval.shape == (S, B, D)
    assert jnp.allclose(out_eval, ref, atol=1e-6, rtol=1e-6)

    # Training mode exercises the in-kernel dropout path.
    p = 0.1
    out_train = jax.block_until_ready(
        learnable_positional_encoding(x, pe, dropout_p=p, training=True, seed=1234))
    assert out_train.shape == (S, B, D)
    keep_mask = out_train != 0.0
    # Kept entries equal (x + pe) / (1 - p); dropped entries are exactly 0.
    assert jnp.allclose(jnp.where(keep_mask, out_train, 0.0),
                        jnp.where(keep_mask, ref / (1.0 - p), 0.0),
                        atol=1e-5, rtol=1e-5)
    drop_frac = 1.0 - float(jnp.mean(keep_mask.astype(jnp.float32)))
    assert 0.0 < drop_frac < 0.5  # ~p expected; loose statistical bound

    print("KERNEL_OK")
</pallas_src>

<mosaic_0001>
module attributes {stable_mosaic.version = 11 : i64} {
  func.func @_pe_dropout_kernel(%arg0: i32, %arg1: memref<1xi32, #tpu.memory_space<smem>>, %arg2: memref<8x512xf32, #tpu.memory_space<vmem>>, %arg3: memref<8x128xf32, #tpu.memory_space<vmem>>, %arg4: memref<8x512xf32, #tpu.memory_space<vmem>>) attributes {dimension_semantics = [#tpu.dimension_semantics<parallel>], iteration_bounds = array<i64: 1>, scalar_prefetch = 1 : i64, scratch_operands = 0 : i64, tpu.core_type = #tpu.core_type<tc>, window_params = [{transform_indices = @transform_0, window_bounds = array<i64: 8, 512>}, {transform_indices = @transform_1, window_bounds = array<i64: 8, 128>}, {transform_indices = @transform_2, window_bounds = array<i64: 8, 512>}]} {
    %c0 = arith.constant 0 : index
    %c0_0 = arith.constant 0 : index
    %0 = vector.load %arg2[%c0, %c0_0] : memref<8x512xf32, #tpu.memory_space<vmem>>, vector<8x512xf32>
    %c0_1 = arith.constant 0 : index
    %c0_2 = arith.constant 0 : index
    %1 = vector.load %arg3[%c0_1, %c0_2] : memref<8x128xf32, #tpu.memory_space<vmem>>, vector<8x128xf32>
    %2 = tpu.concatenate %1, %1, %1, %1 in 1 : vector<8x128xf32>, vector<8x128xf32>, vector<8x128xf32>, vector<8x128xf32> -> vector<8x512xf32>
    %3 = arith.addf %0, %2 : vector<8x512xf32>
    %c0_3 = arith.constant 0 : index
    %c0_4 = arith.constant 0 : index
    %4 = vector.load %arg4[%c0_3, %c0_4] : memref<8x512xf32, #tpu.memory_space<vmem>>, vector<8x512xf32>
    tpu.vector_store %arg4[%c0_3, %c0_4], %3 {strides = array<i32>} : memref<8x512xf32, #tpu.memory_space<vmem>>, vector<8x512xf32>,
    return
  }
  func.func @transform_0(%arg0: i32, %arg1: memref<1xi32, #tpu.memory_space<smem>>) -> (i32, i32) {
    %c0_i32 = arith.constant 0 : i32
    %c0_i32_0 = arith.constant 0 : i32
    return %arg0, %c0_i32 : i32, i32
  }
  func.func @transform_1(%arg0: i32, %arg1: memref<1xi32, #tpu.memory_space<smem>>) -> (i32, i32) {
    %c0_i32 = arith.constant 0 : i32
    %c0_i32_0 = arith.constant 0 : i32
    return %arg0, %c0_i32 : i32, i32
  }
  func.func @transform_2(%arg0: i32, %arg1: memref<1xi32, #tpu.memory_space<smem>>) -> (i32, i32) {
    %c0_i32 = arith.constant 0 : i32
    %c0_i32_0 = arith.constant 0 : i32
    return %arg0, %c0_i32 : i32, i32
  }
}

</mosaic_0001>

<llo_original>
// kernel: tpu_custom_call.1
$region0: #{tpu_custom_call.1}
  #allocation0 [shape = 'u32[]', space=smem, size = 0x4, offset = 0x4, fixed_abs, tag = 'smem constant byte address 0x4 - core index']
  #allocation1 [shape = 'u32[144,128]{1,0:T(1,128)}', space=vmem, size = 0x12000, scoped, tag = 'internal scratch']
  #allocation2 [shape = 's32[1]{0}', space=sflag, size = 0x4, scoped, tag = 'scoped memory for tpu_custom_call.1']
  #allocation3 [shape = 's32[1]{0:T(128)S(6)}', space=smem, size = 0x200, scoped, tag = 'prefetched SMEM operand 0']
  %s0 = inlined_call_operand.<no memory space> [shape: s32[1], index: 0, kind: input, shape index: {}]
  %s1 = inlined_call_operand.hbm [shape: f32[8,512], index: 1, kind: input, shape index: {}]
  %s2 = inlined_call_operand.hbm [shape: f32[1024,128], index: 2, kind: input, shape index: {}]
  %s3 = inlined_call_operand.hbm [shape: f32[8,512], index: 3, kind: output, shape index: {}]
  %s4 = sld [smem:[#allocation0]]
  $region26: #{tpu_custom_call.1} parent=0
    _
  %s6 = ssub.s32 1, %s4
  %s7 = scalar_select 0, %s6, %s4
  %8 = sst [smem:[#allocation3]] %s0
  $region1: #{tpu_custom_call.1} parent=0
    #allocation4 [shape = 'u8[16384]{0}', space=vmem, size = 0x4000, scoped, tag = 'input window, operand 1, single buffered']
    #allocation5 [shape = 's32[1]{0}', space=sflag, size = 0x4, scoped, tag = 'scoped memory for tpu_custom_call.1']
    #allocation6 [shape = 's32[1]{0}', space=sflag, size = 0x4, scoped, tag = 'scoped memory for tpu_custom_call.1']
    #allocation7 [shape = 'u8[4096]{0}', space=vmem, size = 0x1000, scoped, tag = 'input window, operand 2, single buffered']
    #allocation8 [shape = 's32[1]{0}', space=sflag, size = 0x4, scoped, tag = 'scoped memory for tpu_custom_call.1']
    #allocation9 [shape = 'u8[16384]{0}', space=vmem, size = 0x4000, scoped, tag = 'output window, operand 0, single buffered']
    %9 = vsyncpa [#allocation5], 0
    %10 = vsyncpa [#allocation8], 0
    %11 = vsyncpa [#allocation6], 0
    // Predicated region
    $region2: #{tpu_custom_call.1} parent=1 // pred_check
      _
    $region3: #{tpu_custom_call.1} parent=1 // pred_check_branch
      %13 = sbr.rel (0) target = $region5
    $region4: #{tpu_custom_call.1} parent=1 // pred_region
      %s15 = ssub.s32 512, 512
      %16 = vsyncadd [#allocation5], %s15
      %s18 = sshll.u32 [#allocation4], 4
      %s19 = int_to_ptr.vmem [resolvable:$true] %s18
      %21 = dma.hbm_to_vmem [thread:$0]  %s1, 512, %s19, [#allocation5]
    $region5: #{tpu_custom_call.1} parent=1 // pred_fallthru
      _
    // Predicated region
    $region6: #{tpu_custom_call.1} parent=1 // pred_check
      _
    $region7: #{tpu_custom_call.1} parent=1 // pred_check_branch
      %23 = sbr.rel (0) target = $region9
    $region8: #{tpu_custom_call.1} parent=1 // pred_region
      %s25 = ssub.s32 128, 128
      %26 = vsyncadd [#allocation8], %s25
      %s28 = sshll.u32 [#allocation7], 4
      %s29 = int_to_ptr.vmem [resolvable:$true] %s28
      %31 = dma.hbm_to_vmem [thread:$0]  %s2, 128, %s29, [#allocation8]
    $region9: #{tpu_custom_call.1} parent=1 // pred_fallthru
      _
    // Predicated region
    $region10: #{tpu_custom_call.1} parent=1 // pred_check
      _
    $region11: #{tpu_custom_call.1} parent=1 // pred_check_branch
      %33 = sbr.rel (0) target = $region13
    $region12: #{tpu_custom_call.1} parent=1 // pred_region
      %34 = dma.done [#allocation5], 512
    $region13: #{tpu_custom_call.1} parent=1 // pred_fallthru
      _
    // Predicated region
    $region14: #{tpu_custom_call.1} parent=1 // pred_check
      _
    $region15: #{tpu_custom_call.1} parent=1 // pred_check_branch
      %36 = sbr.rel (0) target = $region17
    $region16: #{tpu_custom_call.1} parent=1 // pred_region
      %37 = dma.done [#allocation8], 128
    $region17: #{tpu_custom_call.1} parent=1 // pred_fallthru
      _
    %v38 = vld [vmem:[#allocation4] sm:$0xff]
    %v39 = vld [vmem:[#allocation4 + $0x8] sm:$0xff]
    %v40 = vld [vmem:[#allocation4 + $0x10] sm:$0xff]
    %v41 = vld [vmem:[#allocation4 + $0x18] sm:$0xff]
    %v42 = vld [vmem:[#allocation7] sm:$0xff]
    %v43 = vadd.f32 %v38, %v42
    %v44 = vadd.f32 %v39, %v42
    %v45 = vadd.f32 %v40, %v42
    %v46 = vadd.f32 %v41, %v42
    %47 = vst [vmem:[#allocation9] sm:$0xff] %v43
    %48 = vst [vmem:[#allocation9 + $0x8] sm:$0xff] %v44
    %49 = vst [vmem:[#allocation9 + $0x10] sm:$0xff] %v45
    %50 = vst [vmem:[#allocation9 + $0x18] sm:$0xff] %v46
    // Predicated region
    $region18: #{tpu_custom_call.1} parent=1 // pred_check
      _
    $region19: #{tpu_custom_call.1} parent=1 // pred_check_branch
      %52 = sbr.rel (0) target = $region21
    $region20: #{tpu_custom_call.1} parent=1 // pred_region
      %s54 = ssub.s32 512, 512
      %55 = vsyncadd [#allocation6], %s54
      %s57 = sshll.u32 [#allocation9], 4
      %s58 = int_to_ptr.vmem [resolvable:$true] %s57
      %60 = dma.vmem_to_hbm [thread:$0]  %s58, 512, %s3, [#allocation6]
    $region21: #{tpu_custom_call.1} parent=1 // pred_fallthru
      _
    // Predicated region
    $region22: #{tpu_custom_call.1} parent=1 // pred_check
      _
    $region23: #{tpu_custom_call.1} parent=1 // pred_check_branch
      %62 = sbr.rel (0) target = $region25
    $region24: #{tpu_custom_call.1} parent=1 // pred_region
      %63 = dma.done [#allocation6], 512
    $region25: #{tpu_custom_call.1} parent=1 // pred_fallthru
      _
    %64 = vsyncpa [#allocation5], 1
    %65 = vsyncpa [#allocation8], 1
    %66 = vsyncpa [#allocation6], 1

</llo_original>
